<compile_context>
chip_gen: v6e
topology: v6e:2x2x1
jax: 0.10.0
libtpu: 0.0.40
codegen_flags: <defaults>
</compile_context>

<pallas_src>
import jax
import jax.numpy as jnp
from jax import lax
from jax.experimental import pallas as pl
from jax.experimental.pallas import tpu as pltpu


def _conv3bn_kernel(x_ref, w_ref, scale_ref, shift_ref, o_ref):
    # x_ref:     (B, H, W*Cin)      lane-flattened NHWC images (B = batch_tile)
    # w_ref:     (K_pad, W*Cout)    banded conv weights stacked along K
    #                               (K order: [kh=0 | kh=1 | kh=2 | zero pad])
    # scale_ref: (1, W*Cout)        folded BN scale, tiled across W
    # shift_ref: (1, W*Cout)        folded (conv bias + BN) shift, tiled across W
    # o_ref:     (B, H, W*Cout)     lane-dense output
    B, H, WC = x_ref.shape
    WCout = o_ref.shape[2]
    k_pad = w_ref.shape[0]

    x = x_ref[...]                                           # (B, H, WC)
    zrow = jnp.zeros((B, 1, WC), x.dtype)
    # H-direction halo as compile-time zero rows (no scratch, no per-step zeroing):
    up = jnp.concatenate([zrow, x[:, :H - 1, :]], axis=1)    # row h <- x[h-1]
    down = jnp.concatenate([x[:, 1:, :], zrow], axis=1)      # row h <- x[h+1]
    parts = [up, x, down]
    if k_pad > 3 * WC:                                       # lane-dense K (192 -> 256)
        parts.append(jnp.zeros((B, H, k_pad - 3 * WC), x.dtype))
    patch = jnp.concatenate(parts, axis=2).reshape(B * H, k_pad)

    # Entire 3x3 conv for the block = ONE MXU matmul, f32 accumulation.
    acc = jnp.dot(patch, w_ref[...], preferred_element_type=jnp.float32)

    # Fused (conv bias + BatchNorm) epilogue + ReLU; lane-dense store.
    acc = acc * scale_ref[...] + shift_ref[...]
    o_ref[...] = jnp.maximum(acc, 0.0).reshape(B, H, WCout).astype(o_ref.dtype)


def _pick_batch_tile(n, h, target_rows=256):
    """Largest divisor of n with batch_tile*h <= target_rows, while keeping
    >= 2 grid steps when n >= 2 (so both v7x TensorCores get work via the
    'parallel' grid axis)."""
    if n <= 1:
        return 1
    cap = max(1, min(target_rows // max(h, 1), n // 2))
    bt = 1
    for d in range(1, cap + 1):
        if n % d == 0:
            bt = d
    return bt


def _build_stacked_weights(weight, W, k_pad, dtype):
    """wstack[(kh*W + w_in)*Cin + ci, w_out*Cout + co] = weight[co, ci, kh, kw]
    with kw = w_in - w_out + 1 in {0,1,2}; out-of-range taps (the zero pad in
    the W direction) are simply zero rows, as is the K padding to k_pad."""
    Cout, Cin, _, _ = weight.shape
    wt = jnp.transpose(weight, (2, 3, 1, 0))                 # (kh, kw, Cin, Cout)
    w_in = jnp.arange(W)[:, None]
    w_out = jnp.arange(W)[None, :]
    kw = jnp.arange(3)[:, None, None]
    sel = (w_in[None] - w_out[None] + 1 == kw).astype(weight.dtype)   # (3, W, W)
    wband = jnp.einsum('xrw,kxio->kriwo', sel, wt)           # (3, W, Cin, W, Cout)
    wstack = wband.reshape(3 * W * Cin, W * Cout)
    if k_pad > 3 * W * Cin:
        wstack = jnp.concatenate(
            [wstack, jnp.zeros((k_pad - 3 * W * Cin, W * Cout), wstack.dtype)],
            axis=0)
    return wstack.astype(dtype)


def conv3bn_forward(x_nchw, weight, bias, bn_scale, bn_shift, *,
                    use_bf16=False, batch_tile=None):
    """Conv3BN forward.

    x_nchw: (N, Cin, H, W) f32, weight: (Cout, Cin, 3, 3), bias/bn_*: (Cout,).
    Computes relu(bn_scale * (conv3x3_pad1(x) + bias) + bn_shift), NCHW out.
    """
    N, Cin, H, W = x_nchw.shape
    Cout = weight.shape[0]
    WC, WCout = W * Cin, W * Cout
    k_pad = ((3 * WC + 127) // 128) * 128      # lane-dense K for the fused matmul

    if batch_tile is None:
        batch_tile = _pick_batch_tile(N, H)
    assert N % batch_tile == 0, "batch_tile must divide N"

    # bf16 operands (v6e/v7x MXU native rate); accumulation/epilogue stay f32.
    in_dtype = jnp.bfloat16 if use_bf16 else jnp.float32

    # NCHW -> lane-flattened NHWC (N, H, W*Cin).  Interface glue only; no pad.
    x_flat = jnp.transpose(x_nchw, (0, 2, 3, 1)).reshape(N, H, WC).astype(in_dtype)
    wstack = _build_stacked_weights(weight, W, k_pad, in_dtype)

    # Fold the conv bias into the BN shift and tile per-channel vectors across
    # W so the kernel epilogue is a single lane-dense fused multiply-add.
    # TODO(synk): training-mode BatchNorm (batch stats + running-stat updates)
    # is not implemented; BN is applied in eval mode as folded scale/shift.
    shift_folded = bias * bn_scale + bn_shift
    scale_t = jnp.tile(bn_scale, W).reshape(1, WCout).astype(jnp.float32)
    shift_t = jnp.tile(shift_folded, W).reshape(1, WCout).astype(jnp.float32)

    out_flat = pl.pallas_call(
        _conv3bn_kernel,
        out_shape=jax.ShapeDtypeStruct((N, H, WCout), jnp.float32),
        grid_spec=pltpu.PrefetchScalarGridSpec(
            num_scalar_prefetch=0,
            grid=(N // batch_tile,),
            in_specs=[
                pl.BlockSpec((batch_tile, H, WC), lambda n: (n, 0, 0)),
                pl.BlockSpec((k_pad, WCout), lambda n: (0, 0)),
                pl.BlockSpec((1, WCout), lambda n: (0, 0)),
                pl.BlockSpec((1, WCout), lambda n: (0, 0)),
            ],
            out_specs=pl.BlockSpec((batch_tile, H, WCout), lambda n: (n, 0, 0)),
        ),
        # Working set (< 0.5 MB incl. double buffering) is far below the scoped
        # VMEM defaults on v5e/v6e/v7x, so no vmem_limit_bytes override needed.
        compiler_params=pltpu.CompilerParams(
            dimension_semantics=("parallel",)),
    )(x_flat, wstack, scale_t, shift_t)

    # (N, H, W*Cout) -> (N, H, W, Cout) (free reshape) -> NCHW (interface).
    return jnp.transpose(out_flat.reshape(N, H, W, Cout), (0, 3, 1, 2))


def _reference(x_nchw, weight, bias, bn_scale, bn_shift):
    y = lax.conv_general_dilated(
        x_nchw, weight, window_strides=(1, 1), padding=((1, 1), (1, 1)),
        dimension_numbers=("NCHW", "OIHW", "NCHW"))
    y = y + bias[None, :, None, None]
    y = y * bn_scale[None, :, None, None] + bn_shift[None, :, None, None]
    return jnp.maximum(y, 0.0)


if __name__ == "__main__":
    key = jax.random.PRNGKey(0)
    N, Cin, Cout, H, W = 2, 4, 8, 16, 16
    bn = True  # exercise the BatchNorm path

    k_x, k_w, k_b, k_g, k_be, k_m, k_v = jax.random.split(key, 7)
    x = jax.random.normal(k_x, (N, Cin, H, W), dtype=jnp.float32)
    weight = jax.random.normal(k_w, (Cout, Cin, 3, 3), dtype=jnp.float32) * 0.1
    bias = jax.random.normal(k_b, (Cout,), dtype=jnp.float32) * 0.1

    if bn:
        eps = 1e-5
        gamma = 1.0 + 0.1 * jax.random.normal(k_g, (Cout,), dtype=jnp.float32)
        beta = 0.1 * jax.random.normal(k_be, (Cout,), dtype=jnp.float32)
        running_mean = 0.1 * jax.random.normal(k_m, (Cout,), dtype=jnp.float32)
        running_var = 1.0 + 0.1 * jnp.abs(
            jax.random.normal(k_v, (Cout,), dtype=jnp.float32))
        bn_scale = gamma / jnp.sqrt(running_var + eps)
        bn_shift = beta - running_mean * bn_scale
    else:
        bn_scale = jnp.ones((Cout,), dtype=jnp.float32)
        bn_shift = jnp.zeros((Cout,), dtype=jnp.float32)

    ref = _reference(x, weight, bias, bn_scale, bn_shift)

    # f32 path: exact-semantics check.
    out = conv3bn_forward(x, weight, bias, bn_scale, bn_shift)
    out = jax.block_until_ready(out)
    assert out.shape == (N, Cout, H, W)
    assert jnp.allclose(out, ref, atol=1e-4, rtol=1e-4), "f32 mismatch vs reference"

    # bf16-operand path (the v6e/v7x MXU-rate lever); f32 accumulation keeps
    # the error at bf16-input quantization level, so use a loose tolerance.
    out_bf16 = conv3bn_forward(x, weight, bias, bn_scale, bn_shift, use_bf16=True)
    out_bf16 = jax.block_until_ready(out_bf16)
    assert out_bf16.shape == (N, Cout, H, W)
    assert jnp.allclose(out_bf16, ref, atol=8e-2, rtol=8e-2), "bf16 mismatch vs reference"

    print("KERNEL_OK")
</pallas_src>

<mosaic_0001>
module attributes {stable_mosaic.version = 11 : i64} {
  func.func @_conv3bn_kernel(%arg0: i32, %arg1: memref<1x16x64xf32, #tpu.memory_space<vmem>>, %arg2: memref<256x128xf32, #tpu.memory_space<vmem>>, %arg3: memref<1x128xf32, #tpu.memory_space<vmem>>, %arg4: memref<1x128xf32, #tpu.memory_space<vmem>>, %arg5: memref<1x16x128xf32, #tpu.memory_space<vmem>>) attributes {dimension_semantics = [#tpu.dimension_semantics<parallel>], iteration_bounds = array<i64: 2>, scalar_prefetch = 0 : i64, scratch_operands = 0 : i64, tpu.core_type = #tpu.core_type<tc>, window_params = [{transform_indices = @transform_0, window_bounds = array<i64: 1, 16, 64>}, {pipeline_mode = #tpu.pipeline_mode<synchronous>, transform_indices = @transform_1, window_bounds = array<i64: 256, 128>}, {pipeline_mode = #tpu.pipeline_mode<synchronous>, transform_indices = @transform_2, window_bounds = array<i64: 1, 128>}, {pipeline_mode = #tpu.pipeline_mode<synchronous>, transform_indices = @transform_3, window_bounds = array<i64: 1, 128>}, {transform_indices = @transform_4, window_bounds = array<i64: 1, 16, 128>}]} {
    %c0 = arith.constant 0 : index
    %c0_0 = arith.constant 0 : index
    %c0_1 = arith.constant 0 : index
    %0 = vector.load %arg1[%c0, %c0_0, %c0_1] : memref<1x16x64xf32, #tpu.memory_space<vmem>>, vector<1x16x64xf32>
    %cst = arith.constant 0.000000e+00 : f32
    %1 = vector.broadcast %cst : f32 to vector<1x1x64xf32>
    %2 = vector.extract_strided_slice %0 {offsets = [0, 0, 0], sizes = [1, 15, 64], strides = [1, 1, 1]} : vector<1x16x64xf32> to vector<1x15x64xf32>
    %3 = tpu.concatenate %1, %2 in 1 : vector<1x1x64xf32>, vector<1x15x64xf32> -> vector<1x16x64xf32>
    %4 = vector.extract_strided_slice %0 {offsets = [0, 1, 0], sizes = [1, 15, 64], strides = [1, 1, 1]} : vector<1x16x64xf32> to vector<1x15x64xf32>
    %5 = tpu.concatenate %4, %1 in 1 : vector<1x15x64xf32>, vector<1x1x64xf32> -> vector<1x16x64xf32>
    %cst_2 = arith.constant 0.000000e+00 : f32
    %6 = vector.broadcast %cst_2 : f32 to vector<1x16x64xf32>
    %7 = tpu.concatenate %3, %0, %5, %6 in 2 : vector<1x16x64xf32>, vector<1x16x64xf32>, vector<1x16x64xf32>, vector<1x16x64xf32> -> vector<1x16x256xf32>
    %8 = vector.shape_cast %7 : vector<1x16x256xf32> to vector<16x256xf32>
    %c0_3 = arith.constant 0 : index
    %c0_4 = arith.constant 0 : index
    %9 = vector.load %arg2[%c0_3, %c0_4] : memref<256x128xf32, #tpu.memory_space<vmem>>, vector<256x128xf32>
    %cst_5 = arith.constant dense<0.000000e+00> : vector<16x128xf32>
    %10 = tpu.matmul %8, %9, %cst_5 {dimension_numbers = #tpu.dot_dimension_numbers<[1], [0], [0], [1], [0, 0, 1, 1], [], []>} : vector<16x256xf32>, vector<256x128xf32>, vector<16x128xf32> -> vector<16x128xf32>
    %c0_6 = arith.constant 0 : index
    %c0_7 = arith.constant 0 : index
    %11 = vector.load %arg3[%c0_6, %c0_7] : memref<1x128xf32, #tpu.memory_space<vmem>>, vector<1x128xf32>
    %12 = vector.broadcast %11 : vector<1x128xf32> to vector<16x128xf32>
    %13 = arith.mulf %10, %12 : vector<16x128xf32>
    %c0_8 = arith.constant 0 : index
    %c0_9 = arith.constant 0 : index
    %14 = vector.load %arg4[%c0_8, %c0_9] : memref<1x128xf32, #tpu.memory_space<vmem>>, vector<1x128xf32>
    %15 = vector.broadcast %14 : vector<1x128xf32> to vector<16x128xf32>
    %16 = arith.addf %13, %15 : vector<16x128xf32>
    %cst_10 = arith.constant 0.000000e+00 : f32
    %17 = vector.broadcast %cst_10 : f32 to vector<16x128xf32>
    %18 = arith.maximumf %16, %17 : vector<16x128xf32>
    %19 = vector.shape_cast %18 : vector<16x128xf32> to vector<1x16x128xf32>
    %c0_11 = arith.constant 0 : index
    %c0_12 = arith.constant 0 : index
    %c0_13 = arith.constant 0 : index
    %20 = vector.load %arg5[%c0_11, %c0_12, %c0_13] : memref<1x16x128xf32, #tpu.memory_space<vmem>>, vector<1x16x128xf32>
    tpu.vector_store %arg5[%c0_11, %c0_12, %c0_13], %19 {strides = array<i32>} : memref<1x16x128xf32, #tpu.memory_space<vmem>>, vector<1x16x128xf32>,
    return
  }
  func.func @transform_0(%arg0: i32) -> (i32, i32, i32) {
    %c0_i32 = arith.constant 0 : i32
    %c0_i32_0 = arith.constant 0 : i32
    %c0_i32_1 = arith.constant 0 : i32
    return %arg0, %c0_i32, %c0_i32_0 : i32, i32, i32
  }
  func.func @transform_1(%arg0: i32) -> (i32, i32) {
    %c0_i32 = arith.constant 0 : i32
    %c0_i32_0 = arith.constant 0 : i32
    %c0_i32_1 = arith.constant 0 : i32
    return %c0_i32, %c0_i32_0 : i32, i32
  }
  func.func @transform_2(%arg0: i32) -> (i32, i32) {
    %c0_i32 = arith.constant 0 : i32
    %c0_i32_0 = arith.constant 0 : i32
    %c0_i32_1 = arith.constant 0 : i32
    return %c0_i32, %c0_i32_0 : i32, i32
  }
  func.func @transform_3(%arg0: i32) -> (i32, i32) {
    %c0_i32 = arith.constant 0 : i32
    %c0_i32_0 = arith.constant 0 : i32
    %c0_i32_1 = arith.constant 0 : i32
    return %c0_i32, %c0_i32_0 : i32, i32
  }
  func.func @transform_4(%arg0: i32) -> (i32, i32, i32) {
    %c0_i32 = arith.constant 0 : i32
    %c0_i32_0 = arith.constant 0 : i32
    %c0_i32_1 = arith.constant 0 : i32
    return %arg0, %c0_i32, %c0_i32_0 : i32, i32, i32
  }
}

</mosaic_0001>

<llo_original>
// kernel: tpu_custom_call.1
$region0: #{tpu_custom_call.1}
  #allocation0 [shape = 'u32[]', space=smem, size = 0x4, offset = 0x4, fixed_abs, tag = 'smem constant byte address 0x4 - core index']
  #allocation1 [shape = 'u32[144,128]{1,0:T(1,128)}', space=vmem, size = 0x12000, scoped, tag = 'internal scratch']
  %s0 = inlined_call_operand.hbm [shape: f32[2,16,64], index: 0, kind: input, shape index: {}]
  %s1 = inlined_call_operand.hbm [shape: f32[256,128], index: 1, kind: input, shape index: {}]
  %s2 = inlined_call_operand.vmem [shape: f32[1,128], index: 2, kind: input, shape index: {}]
  %s3 = inlined_call_operand.vmem [shape: f32[1,128], index: 3, kind: input, shape index: {}]
  %s4 = inlined_call_operand.hbm [shape: f32[2,16,128], index: 4, kind: output, shape index: {}]
  %s5 = sld [smem:[#allocation0]]
  $region57: #{tpu_custom_call.1} parent=0
    _
  %s7 = ssub.s32 1, %s5
  %s8 = scalar_select 0, %s7, %s5
  $region1: #{tpu_custom_call.1} parent=0
    #allocation2 [shape = 'u8[16384]{0}', space=vmem, size = 0x4000, scoped, tag = 'input window, operand 0']
    #allocation3 [shape = 's32[2]{0}', space=sflag, size = 0x8, scoped, tag = 'scoped memory for tpu_custom_call.1']
    #allocation4 [shape = 's32[2]{0}', space=sflag, size = 0x8, scoped, tag = 'scoped memory for tpu_custom_call.1']
    #allocation5 [shape = 'u8[131072]{0}', space=vmem, size = 0x20000, scoped, tag = 'input window, operand 1, single buffered']
    #allocation6 [shape = 's32[1]{0}', space=sflag, size = 0x4, scoped, tag = 'scoped memory for tpu_custom_call.1']
    #allocation7 [shape = 'u8[16384]{0}', space=vmem, size = 0x4000, scoped, tag = 'output window, operand 0']
    %9 = vsyncpa [#allocation3], 0
    %s10 = scalar_lea.sflag [#allocation3], 1
    %11 = vsyncpa %s10, 0
    %12 = vsyncpa [#allocation6], 0
    %13 = vsyncpa [#allocation4], 0
    %s14 = scalar_lea.sflag [#allocation4], 1
    %15 = vsyncpa %s14, 0
    loop: start=0, step=1, limit=4
    $region2: #{tpu_custom_call.1} parent=1 // loop_pre_header
      _
    $region3: #{tpu_custom_call.1} parent=1 // loop_header
      %s17 = sphi 0, %s21
      %p18 = scmp.ge.s32.totalorder %s17, 4
      %s27 = sphi 0, %s29
      %s30 = sphi 0, %s27
      %s31 = sphi 0, %s30
      %s47 = sphi 0, %s31
      %s51 = sphi 0, %s51
      %s53 = sphi 0, %s51
      %s54 = sphi 0, %s53
      %s68 = sphi 0, %s54
      %s72 = sphi 0, %s72
      %s74 = sphi 0, %s72
      %s75 = sphi 0, %s74
      %s89 = sphi 0, %s75
      %s93 = sphi 0, %s93
      %s95 = sphi 0, %s93
      %s96 = sphi 0, %s95
      %s110 = sphi 0, %s96
      %s116 = sphi 0, %s118
      %s119 = sphi 0, %s116
      %s120 = sphi 0, %s119
      %s136 = sphi 0, %s120
    $region4: #{tpu_custom_call.1} parent=1 // loop_header_branch
      %20 = sbr.rel (%p18) target = $region8
    $region5: #{tpu_custom_call.1} parent=1 // loop_body
      %s22 = ssub.s32 %s17, 1
      %s23 = ssub.s32 %s17, 2
      %s24 = sadd.s32 %s17, 1
      %s25 = ssub.s32 %s17, %s24
      %p26 = scmp.eq.s32.totalorder %s25, 0
      %s28 = sadd.s32 %s27, 1
      %s29 = scalar_select %p26, %s27, %s28
      %p32 = pneg %p26
      %p33 = scmp.eq.s32.totalorder %s17, 1
      %p34 = por %p32, %p33
      %p35 = scmp.ne.s32.totalorder %s27, %s30
      %p36 = scmp.eq.s32.totalorder %s17, 0
      %p37 = por %p35, %p36
      %p38 = scmp.ne.s32.totalorder %s27, %s30
      %p39 = scmp.eq.s32.totalorder %s22, 1
      %p40 = por %p38, %p39
      %p41 = scmp.ne.s32.totalorder %s30, %s31
      %p42 = scmp.eq.s32.totalorder %s22, 0
      %p43 = por %p41, %p42
      %p44 = scmp.ne.s32.totalorder %s30, %s31
      %p45 = scmp.eq.s32.totalorder %s23, 1
      %p46 = por %p44, %p45
      %p48 = scmp.ne.s32.totalorder %s31, %s47
      %p49 = scmp.eq.s32.totalorder %s23, 0
      %p50 = por %p48, %p49
      %s52 = sadd.s32 %s51, 1
      %p55 = scmp.eq.s32.totalorder %s17, 1
      %p56 = scmp.ne.s32.totalorder %s51, %s53
      %p57 = scmp.eq.s32.totalorder %s17, 0
      %p58 = por %p56, %p57
      %p59 = scmp.ne.s32.totalorder %s51, %s53
      %p60 = scmp.eq.s32.totalorder %s22, 1
      %p61 = por %p59, %p60
      %p62 = scmp.ne.s32.totalorder %s53, %s54
      %p63 = scmp.eq.s32.totalorder %s22, 0
      %p64 = por %p62, %p63
      %p65 = scmp.ne.s32.totalorder %s53, %s54
      %p66 = scmp.eq.s32.totalorder %s23, 1
      %p67 = por %p65, %p66
      %p69 = scmp.ne.s32.totalorder %s54, %s68
      %p70 = scmp.eq.s32.totalorder %s23, 0
      %p71 = por %p69, %p70
      %s73 = sadd.s32 %s72, 1
      %p76 = scmp.eq.s32.totalorder %s17, 1
      %p77 = scmp.ne.s32.totalorder %s72, %s74
      %p78 = scmp.eq.s32.totalorder %s17, 0
      %p79 = por %p77, %p78
      %p80 = scmp.ne.s32.totalorder %s72, %s74
      %p81 = scmp.eq.s32.totalorder %s22, 1
      %p82 = por %p80, %p81
      %p83 = scmp.ne.s32.totalorder %s74, %s75
      %p84 = scmp.eq.s32.totalorder %s22, 0
      %p85 = por %p83, %p84
      %p86 = scmp.ne.s32.totalorder %s74, %s75
      %p87 = scmp.eq.s32.totalorder %s23, 1
      %p88 = por %p86, %p87
      %p90 = scmp.ne.s32.totalorder %s75, %s89
      %p91 = scmp.eq.s32.totalorder %s23, 0
      %p92 = por %p90, %p91
      %s94 = sadd.s32 %s93, 1
      %p97 = scmp.eq.s32.totalorder %s17, 1
      %p98 = scmp.ne.s32.totalorder %s93, %s95
      %p99 = scmp.eq.s32.totalorder %s17, 0
      %p100 = por %p98, %p99
      %p101 = scmp.ne.s32.totalorder %s93, %s95
      %p102 = scmp.eq.s32.totalorder %s22, 1
      %p103 = por %p101, %p102
      %p104 = scmp.ne.s32.totalorder %s95, %s96
      %p105 = scmp.eq.s32.totalorder %s22, 0
      %p106 = por %p104, %p105
      %p107 = scmp.ne.s32.totalorder %s95, %s96
      %p108 = scmp.eq.s32.totalorder %s23, 1
      %p109 = por %p107, %p108
      %p111 = scmp.ne.s32.totalorder %s96, %s110
      %p112 = scmp.eq.s32.totalorder %s23, 0
      %p113 = por %p111, %p112
      %s114 = ssub.s32 %s17, %s24
      %p115 = scmp.eq.s32.totalorder %s114, 0
      %s117 = sadd.s32 %s116, 1
      %s118 = scalar_select %p115, %s116, %s117
      %p121 = pneg %p115
      %p122 = scmp.eq.s32.totalorder %s17, 1
      %p123 = por %p121, %p122
      %p124 = scmp.ne.s32.totalorder %s116, %s119
      %p125 = scmp.eq.s32.totalorder %s17, 0
      %p126 = por %p124, %p125
      %p127 = scmp.ne.s32.totalorder %s116, %s119
      %p128 = scmp.eq.s32.totalorder %s22, 1
      %p129 = por %p127, %p128
      %p130 = scmp.ne.s32.totalorder %s119, %s120
      %p131 = scmp.eq.s32.totalorder %s22, 0
      %p132 = por %p130, %p131
      %p133 = scmp.ne.s32.totalorder %s119, %s120
      %p134 = scmp.eq.s32.totalorder %s23, 1
      %p135 = por %p133, %p134
      %p137 = scmp.ne.s32.totalorder %s120, %s136
      %p138 = scmp.eq.s32.totalorder %s23, 0
      %p139 = por %p137, %p138
      %p140 = scmp.le.s32.totalorder 1, %s17
      %p141 = scmp.lt.s32.totalorder %s17, 3
      %p142 = pnand %p140, %p141
      %p143 = pneg %p142
      // Predicated region
      $region9: #{tpu_custom_call.1} parent=5 // pred_check
        _
      $region10: #{tpu_custom_call.1} parent=5 // pred_check_branch
        %145 = sbr.rel (%p142) target = $region12
      $region11: #{tpu_custom_call.1} parent=5 // pred_region
        %s146 = ssub.s32 %s17, 1
        // Predicated region
        $region13: #{tpu_custom_call.1} parent=11 // pred_check
          %p147 = pneg %p64
        $region14: #{tpu_custom_call.1} parent=11 // pred_check_branch
          %149 = sbr.rel (%p147) target = $region16
        $region15: #{tpu_custom_call.1} parent=11 // pred_region
          %s151 = ssub.s32 4096, 4096
          %152 = vsyncadd [#allocation6], %s151
          %s153 = sshll.u32 [#allocation5], 4
          %s154 = int_to_ptr.vmem [resolvable:$true] %s153
          %159 = dma.hbm_to_vmem [thread:$0]  %s1, 4096, %s154, [#allocation6], 128, 128, 8
        $region16: #{tpu_custom_call.1} parent=11 // pred_fallthru
          _
        // Predicated region
        $region17: #{tpu_custom_call.1} parent=11 // pred_check
          %p160 = pneg %p85
        $region18: #{tpu_custom_call.1} parent=11 // pred_check_branch
          %162 = sbr.rel (%p160) target = $region20
        $region19: #{tpu_custom_call.1} parent=11 // pred_region
          _
        $region20: #{tpu_custom_call.1} parent=11 // pred_fallthru
          _
        // Predicated region
        $region21: #{tpu_custom_call.1} parent=11 // pred_check
          %p163 = pneg %p106
        $region22: #{tpu_custom_call.1} parent=11 // pred_check_branch
          %165 = sbr.rel (%p163) target = $region24
        $region23: #{tpu_custom_call.1} parent=11 // pred_region
          _
        $region24: #{tpu_custom_call.1} parent=11 // pred_fallthru
          _
      $region12: #{tpu_custom_call.1} parent=5 // pred_fallthru
        _
      %p166 = scmp.lt.s32.totalorder %s17, 2
      // Predicated region
      $region25: #{tpu_custom_call.1} parent=5 // pred_check
        %p167 = pneg %p166
      $region26: #{tpu_custom_call.1} parent=5 // pred_check_branch
        %169 = sbr.rel (%p167) target = $region28
      $region27: #{tpu_custom_call.1} parent=5 // pred_region
        // Predicated region
        $region29: #{tpu_custom_call.1} parent=27 // pred_check
          %p170 = pneg %p37
        $region30: #{tpu_custom_call.1} parent=27 // pred_check_branch
          %172 = sbr.rel (%p170) target = $region32
        $region31: #{tpu_custom_call.1} parent=27 // pred_region
          %s173 = sand.u32 %s27, 1
          %s174 = scalar_lea.sflag [#allocation3], %s173
          %s175 = sand.u32 %s27, 1
          %s176 = smul.addr %s175, 16
          %s177 = scalar_lea.vmem [#allocation2], %s176
          %s179 = ssub.s32 256, 256
          %180 = vsyncadd %s174, %s179
          %s181 = smul.addr %s17, 2
          %s182 = smul.addr %s181, 128
          %s183 = scalar_lea.hbm %s0, %s182
          %s184 = sshll.u32 %s177, 4
          %s185 = int_to_ptr.vmem [resolvable:$true] %s184
          %190 = dma.hbm_to_vmem [thread:$0]  %s183, 256, %s185, %s174, 128, 128, 8
        $region32: #{tpu_custom_call.1} parent=27 // pred_fallthru
          _
      $region28: #{tpu_custom_call.1} parent=5 // pred_fallthru
        _
      %p191 = scmp.le.s32.totalorder 1, %s17
      %p192 = scmp.lt.s32.totalorder %s17, 3
      %p193 = pnand %p191, %p192
      %p194 = pneg %p193
      // Predicated region
      $region33: #{tpu_custom_call.1} parent=5 // pred_check
        _
      $region34: #{tpu_custom_call.1} parent=5 // pred_check_branch
        %196 = sbr.rel (%p193) target = $region36
      $region35: #{tpu_custom_call.1} parent=5 // pred_region
        %s197 = ssub.s32 %s17, 1
        %s198 = sand.u32 %s30, 1
        %s199 = scalar_lea.sflag [#allocation3], %s198
        %s200 = sand.u32 %s30, 1
        %s201 = smul.addr %s200, 16
        %s202 = scalar_lea.vmem [#allocation2], %s201
        // Predicated region
        $region37: #{tpu_custom_call.1} parent=35 // pred_check
          %p203 = pneg %p43
        $region38: #{tpu_custom_call.1} parent=35 // pred_check_branch
          %205 = sbr.rel (%p203) target = $region40
        $region39: #{tpu_custom_call.1} parent=35 // pred_region
          %206 = dma.done %s199, 256
        $region40: #{tpu_custom_call.1} parent=35 // pred_fallthru
          _
        // Predicated region
        $region41: #{tpu_custom_call.1} parent=35 // pred_check
          %p207 = pneg %p64
        $region42: #{tpu_custom_call.1} parent=35 // pred_check_branch
          %209 = sbr.rel (%p207) target = $region44
        $region43: #{tpu_custom_call.1} parent=35 // pred_region
          %210 = dma.done [#allocation6], 4096
        $region44: #{tpu_custom_call.1} parent=35 // pred_fallthru
          _
        %s211 = sand.u32 %s30, 1
        %s212 = scalar_lea.sflag [#allocation3], %s211
        %s213 = sand.u32 %s30, 1
        %s214 = smul.addr %s213, 16
        %s215 = scalar_lea.vmem [#allocation2], %s214
        %p216 = pneg %p43
        %p217 = pneg %p40
        %p218 = pneg %p64
        %p219 = pneg %p61
        %p220 = pneg %p85
        %p221 = pneg %p82
        %p222 = pneg %p106
        %p223 = pneg %p103
        %p224 = pneg %p132
        %p225 = pneg %p129
        %s226 = sand.u32 %s119, 1
        %s227 = scalar_lea.sflag [#allocation4], %s226
        %s228 = sand.u32 %s119, 1
        %s229 = smul.addr %s228, 16
        %s230 = scalar_lea.vmem [#allocation7], %s229
        %v231 = vld [vmem:[%s202] sm:$0xff]
        %v232 = vld [vmem:[%s202 + $0x8] sm:$0xff]
        %vm235 = vcmask 1040384
        %v236 = vrot.slane %v231, 7
        %v237 = vrot.slane %v232, 7
        %v238 = vsel %vm235, %v236, %v237
        %v241 = vsel %vm235, 0.0, %v236
        %vm242 = vcmask 1046528
        %v243 = vrot.slane %v231, 1
        %v244 = vrot.slane %v232, 1
        %v245 = vsel %vm242, %v243, %v244
        %v248 = vsel %vm242, %v244, 0.0
        %249 = vrot.lane.b32.xlu0 %v231, 64
        %v250 = vpop.permute.xlu0 %249
        %251 = vrot.lane.b32.xlu0 %v232, 64
        %v252 = vpop.permute.xlu0 %251
        %vm255 = vcmask 523264
        %v256 = vsel %vm255, %v241, %v250
        %v257 = vsel %vm255, %v238, %v252
        %v258 = vsel %vm255, %v245, 0.0
        %v259 = vsel %vm255, %v248, 0.0
        %v260 = vld [vmem:[#allocation5] sm:$0xff]
        %v261 = vld [vmem:[#allocation5 + $0x8] sm:$0xff]
        %v262 = vld [vmem:[#allocation5 + $0x10] sm:$0xff]
        %v263 = vld [vmem:[#allocation5 + $0x18] sm:$0xff]
        %v264 = vld [vmem:[#allocation5 + $0x20] sm:$0xff]
        %v265 = vld [vmem:[#allocation5 + $0x28] sm:$0xff]
        %v266 = vld [vmem:[#allocation5 + $0x30] sm:$0xff]
        %v267 = vld [vmem:[#allocation5 + $0x38] sm:$0xff]
        %v268 = vld [vmem:[#allocation5 + $0x40] sm:$0xff]
        %v269 = vld [vmem:[#allocation5 + $0x48] sm:$0xff]
        %v270 = vld [vmem:[#allocation5 + $0x50] sm:$0xff]
        %v271 = vld [vmem:[#allocation5 + $0x58] sm:$0xff]
        %v272 = vld [vmem:[#allocation5 + $0x60] sm:$0xff]
        %v273 = vld [vmem:[#allocation5 + $0x68] sm:$0xff]
        %v274 = vld [vmem:[#allocation5 + $0x70] sm:$0xff]
        %v275 = vld [vmem:[#allocation5 + $0x78] sm:$0xff]
        %v276 = vld [vmem:[#allocation5 + $0x80] sm:$0xff]
        %v277 = vld [vmem:[#allocation5 + $0x88] sm:$0xff]
        %v278 = vld [vmem:[#allocation5 + $0x90] sm:$0xff]
        %v279 = vld [vmem:[#allocation5 + $0x98] sm:$0xff]
        %v280 = vld [vmem:[#allocation5 + $0xa0] sm:$0xff]
        %v281 = vld [vmem:[#allocation5 + $0xa8] sm:$0xff]
        %v282 = vld [vmem:[#allocation5 + $0xb0] sm:$0xff]
        %v283 = vld [vmem:[#allocation5 + $0xb8] sm:$0xff]
        %v284 = vld [vmem:[#allocation5 + $0xc0] sm:$0xff]
        %v285 = vld [vmem:[#allocation5 + $0xc8] sm:$0xff]
        %v286 = vld [vmem:[#allocation5 + $0xd0] sm:$0xff]
        %v287 = vld [vmem:[#allocation5 + $0xd8] sm:$0xff]
        %v288 = vld [vmem:[#allocation5 + $0xe0] sm:$0xff]
        %v289 = vld [vmem:[#allocation5 + $0xe8] sm:$0xff]
        %v290 = vld [vmem:[#allocation5 + $0xf0] sm:$0xff]
        %v291 = vld [vmem:[#allocation5 + $0xf8] sm:$0xff]
        %292 = vmatprep.subr.mxu0 0.0
        %293 = vmatpush1.msra.mxu0 %v275
        %294 = vmatprep.subr.mxu0 0.0
        %295 = vmatpush1.msra.mxu0 %v274
        %296 = vmatprep.subr.mxu0 0.0
        %297 = vmatpush1.msra.mxu0 %v273
        %298 = vmatprep.subr.mxu0 0.0
        %299 = vmatpush1.msra.mxu0 %v272
        %300 = vmatprep.subr.mxu0 0.0
        %301 = vmatpush1.msra.mxu0 %v271
        %302 = vmatprep.subr.mxu0 0.0
        %303 = vmatpush1.msra.mxu0 %v270
        %304 = vmatprep.subr.mxu0 0.0
        %305 = vmatpush1.msra.mxu0 %v269
        %306 = vmatprep.subr.mxu0 0.0
        %307 = vmatpush1.msra.mxu0 %v268
        %308 = vmatprep.subr.mxu0 0.0
        %309 = vmatpush1.msra.mxu0 %v267
        %310 = vmatprep.subr.mxu0 0.0
        %311 = vmatpush1.msra.mxu0 %v266
        %312 = vmatprep.subr.mxu0 0.0
        %313 = vmatpush1.msra.mxu0 %v265
        %314 = vmatprep.subr.mxu0 0.0
        %315 = vmatpush1.msra.mxu0 %v264
        %316 = vmatprep.subr.mxu0 0.0
        %317 = vmatpush1.msra.mxu0 %v263
        %318 = vmatprep.subr.mxu0 0.0
        %319 = vmatpush1.msra.mxu0 %v262
        %320 = vmatprep.subr.mxu0 0.0
        %321 = vmatpush1.msra.mxu0 %v261
        %322 = vmatprep.subr.mxu0 0.0
        %323 = vmatpush1.msra.mxu0 %v260
        %324 = vmatprep.subr.mxu0 0.0
        %325 = vmatpush2.msra.mxu0 %v291
        %326 = vmatprep.subr.mxu0 0.0
        %327 = vmatpush2.msra.mxu0 %v290
        %328 = vmatprep.subr.mxu0 0.0
        %329 = vmatpush2.msra.mxu0 %v289
        %330 = vmatprep.subr.mxu0 0.0
        %331 = vmatpush2.msra.mxu0 %v288
        %332 = vmatprep.subr.mxu0 0.0
        %333 = vmatpush2.msra.mxu0 %v287
        %334 = vmatprep.subr.mxu0 0.0
        %335 = vmatpush2.msra.mxu0 %v286
        %336 = vmatprep.subr.mxu0 0.0
        %337 = vmatpush2.msra.mxu0 %v285
        %338 = vmatprep.subr.mxu0 0.0
        %339 = vmatpush2.msra.mxu0 %v284
        %340 = vmatprep.subr.mxu0 0.0
        %341 = vmatpush2.msra.mxu0 %v283
        %342 = vmatprep.subr.mxu0 0.0
        %343 = vmatpush2.msra.mxu0 %v282
        %344 = vmatprep.subr.mxu0 0.0
        %345 = vmatpush2.msra.mxu0 %v281
        %346 = vmatprep.subr.mxu0 0.0
        %347 = vmatpush2.msra.mxu0 %v280
        %348 = vmatprep.subr.mxu0 0.0
        %349 = vmatpush2.msra.mxu0 %v279
        %350 = vmatprep.subr.mxu0 0.0
        %351 = vmatpush2.msra.mxu0 %v278
        %352 = vmatprep.subr.mxu0 0.0
        %353 = vmatpush2.msra.mxu0 %v277
        %354 = vmatprep.subr.mxu0 0.0
        %355 = vmatpush2.msra.mxu0 %v276
        %356 = vmatprep.mubr.f32.mxu0 %v258
        %357 = vmatmul.mubr.f32.gmra.mxu0 %v256
        %v358 = vpop.f32.mrf.mxu0
        %v359 = vadd.f32 0.0, %v358
        %v360 = vpop.f32.mrf.mxu0
        %361 = vmatprep.mubr.f32.mxu0 %v259
        %362 = vmatmul.mubr.f32.gmra.mxu0 %v257
        %v363 = vpop.f32.mrf.mxu0
        %v364 = vadd.f32 0.0, %v363
        %v365 = vpop.f32.mrf.mxu0
        %366 = vdwg.mxu0
        %v367 = vld [vmem:[%s2] sm:$0x1]
        %v369 = vlaneseq
        %v370 = vshrl.u32 %v369, 7
        %v371 = vsub.s32 0, %v370
        %v372 = vrot.slane %v367, %v371
        %v374 = vmul.f32 %v359, %v372
        %v375 = vmul.f32 %v364, %v372
        %v376 = vld [vmem:[%s3] sm:$0x1]
        %v378 = vlaneseq
        %v379 = vshrl.u32 %v378, 7
        %v380 = vsub.s32 0, %v379
        %v381 = vrot.slane %v376, %v380
        %v383 = vadd.f32 %v374, %v381
        %v384 = vadd.f32 %v375, %v381
        %v385 = vmax.f32 %v383, 0.0
        %v386 = vmax.f32 %v384, 0.0
        %387 = vst [vmem:[%s230] sm:$0xff] %v385
        %388 = vst [vmem:[%s230 + $0x8] sm:$0xff] %v386
        %s389 = sand.u32 %s119, 1
        %s390 = scalar_lea.sflag [#allocation4], %s389
        %s391 = sand.u32 %s119, 1
        %s392 = smul.addr %s391, 16
        %s393 = scalar_lea.vmem [#allocation7], %s392
        // Predicated region
        $region45: #{tpu_custom_call.1} parent=35 // pred_check
          %p394 = pneg %p129
        $region46: #{tpu_custom_call.1} parent=35 // pred_check_branch
          %396 = sbr.rel (%p394) target = $region48
        $region47: #{tpu_custom_call.1} parent=35 // pred_region
          %s398 = ssub.s32 256, 256
          %399 = vsyncadd %s390, %s398
          %s400 = smul.addr %s22, 2
          %s401 = smul.addr %s400, 128
          %s402 = scalar_lea.hbm %s4, %s401
          %s403 = sshll.u32 %s393, 4
          %s404 = int_to_ptr.vmem [resolvable:$true] %s403
          %409 = dma.vmem_to_hbm [thread:$0]  %s404, 256, %s402, %s390, 128, 128, 8
        $region48: #{tpu_custom_call.1} parent=35 // pred_fallthru
          _
      $region36: #{tpu_custom_call.1} parent=5 // pred_fallthru
        _
      %p410 = scmp.le.s32.totalorder 2, %s17
      // Predicated region
      $region49: #{tpu_custom_call.1} parent=5 // pred_check
        %p411 = pneg %p410
      $region50: #{tpu_custom_call.1} parent=5 // pred_check_branch
        %413 = sbr.rel (%p411) target = $region52
      $region51: #{tpu_custom_call.1} parent=5 // pred_region
        %s414 = ssub.s32 %s17, 2
        // Predicated region
        $region53: #{tpu_custom_call.1} parent=51 // pred_check
          %p415 = pneg %p135
        $region54: #{tpu_custom_call.1} parent=51 // pred_check_branch
          %417 = sbr.rel (%p415) target = $region56
        $region55: #{tpu_custom_call.1} parent=51 // pred_region
          %s418 = sand.u32 %s120, 1
          %s419 = scalar_lea.sflag [#allocation4], %s418
          %s420 = sand.u32 %s120, 1
          %s421 = smul.addr %s420, 16
          %s422 = scalar_lea.vmem [#allocation7], %s421
          %423 = dma.done %s419, 256
        $region56: #{tpu_custom_call.1} parent=51 // pred_fallthru
          _
      $region52: #{tpu_custom_call.1} parent=5 // pred_fallthru
        _
    $region6: #{tpu_custom_call.1} parent=1 // loop_footer
      %s21 = sadd.s32 1, %s17
    $region7: #{tpu_custom_call.1} parent=1 // loop_footer_branch
      %16 = sbr.rel target = $region3
    $region8: #{tpu_custom_call.1} parent=1 // loop_exit
      _
    %424 = vsyncpa [#allocation3], 1
    %s425 = scalar_lea.sflag [#allocation3], 1
    %426 = vsyncpa %s425, 1
    %427 = vsyncpa [#allocation6], 1
    %428 = vsyncpa [#allocation4], 1
    %s429 = scalar_lea.sflag [#allocation4], 1
    %430 = vsyncpa %s429, 1

</llo_original>
